<compile_context>
chip_gen: v5e
topology: v5e:2x2
jax: 0.10.0
libtpu: 0.0.40
codegen_flags: <defaults>
</compile_context>

<pallas_src>
import functools

import jax
import jax.numpy as jnp
import numpy as np
from jax import lax
from jax.experimental import pallas as pl
from jax.experimental.pallas import tpu as pltpu


def _round_up(x, m):
    return ((x + m - 1) // m) * m


# ---------------------------------------------------------------------------- kernel
def _conv_stats_kernel(p_ref, w_ref, y_ref, s_ref):
    """One (tm, Cout) output tile:  y = patches_tile @ W  (MXU, f32 accumulation),
    plus per-tile partial BatchNorm statistics (sum, sum-of-squares) so the full
    conv output never has to be re-read for the BN reduction."""
    y = jnp.dot(p_ref[...], w_ref[...], preferred_element_type=jnp.float32)
    y_ref[...] = y.astype(y_ref.dtype)                       # bf16 (or f32) writeback

    cpad = y.shape[1]
    ssum = jnp.sum(y, axis=0, keepdims=True)                 # (1, Cout) f32
    ssq = jnp.sum(y * y, axis=0, keepdims=True)              # (1, Cout) f32
    # stats block (1, 8, Cout): sublane 0 = sum, sublane 1 = sum of squares.
    row = lax.broadcasted_iota(jnp.int32, (8, cpad), 0)
    stats = jnp.where(row == 0, ssum, 0.0) + jnp.where(row == 1, ssq, 0.0)
    s_ref[...] = stats.reshape(1, 8, cpad)


# ------------------------------------------------------------------------------ glue
def _im2col_nchw(x, kernel_size, stride, padding, k_pad_cols):
    """NCHW -> (N*OH*OW, KH*KW*Cin + k_pad_cols) patch matrix (zero pad columns are
    appended inside the same concat, so there is no extra padding pass)."""
    n, cin, h, w = x.shape
    kh = kw = kernel_size
    oh = (h + 2 * padding - kh) // stride + 1
    ow = (w + 2 * padding - kw) // stride + 1

    x_nhwc = jnp.transpose(x, (0, 2, 3, 1))
    x_pad = jnp.pad(x_nhwc, ((0, 0), (padding, padding), (padding, padding), (0, 0)))

    cols = []
    for i in range(kh):
        for j in range(kw):
            cols.append(x_pad[:, i:i + (oh - 1) * stride + 1:stride,
                                 j:j + (ow - 1) * stride + 1:stride, :])
    if k_pad_cols:
        cols.append(jnp.zeros((n, oh, ow, k_pad_cols), x.dtype))
    patches = jnp.concatenate(cols, axis=-1)
    return patches.reshape(n * oh * ow, kh * kw * cin + k_pad_cols), (oh, ow)


def basic_conv2d(x, weight, gamma, beta, *, kernel_size, stride, padding,
                 eps=1e-3, compute_dtype=jnp.bfloat16):
    """BasicConv2d forward. x: NCHW f32, weight: (Cout, Cin, KH, KW). Returns NCHW f32.

    compute_dtype controls the MXU operand dtype and the conv intermediate stored to
    HBM (accumulation and BN statistics are always f32). jnp.float32 gives the
    PyTorch-exact path; jnp.bfloat16 (default) is the fast path on v5e/v6e/v7x.
    """
    n, cin, h, w = x.shape
    cout = weight.shape[0]
    k_dim = kernel_size * kernel_size * cin
    k_pad = _round_up(k_dim, 8)          # sublane-align the contraction dim (cheap)

    # glue: NCHW -> im2col patch matrix (M, K), cast first so the wrapper
    # materialization happens in the (half-width) compute dtype.
    # TODO(synk): fold the KH*KW taps into the kernel's reduction with manual halo
    # DMAs (memory_space=pl.ANY + make_async_copy) to avoid the im2col expansion.
    x_c = x.astype(compute_dtype)
    patches, (oh, ow) = _im2col_nchw(x_c, kernel_size, stride, padding, k_pad - k_dim)
    m_rows = n * oh * ow

    # Only M is tiled; weight / Cout / K are fully VMEM-resident per grid step.
    # TODO(synk): re-introduce Cout/K tiling for layers too large to keep resident.
    tm = min(512, _round_up(m_rows, 8))
    if _round_up(m_rows, tm) // tm == 1 and tm >= 16:
        tm = _round_up((tm + 1) // 2, 8)     # >=2 parallel M blocks for v7x megacore
    m_pad = _round_up(m_rows, tm)
    if m_pad > m_rows:                       # zero rows: contribute 0 to conv & stats
        patches = jnp.pad(patches, ((0, m_pad - m_rows), (0, 0)))
    num_m = m_pad // tm

    # OIHW -> (KH, KW, Cin, Cout) -> (K, Cout), matching the [kh][kw][cin] patch order.
    w_mat = jnp.transpose(weight, (2, 3, 1, 0)).reshape(k_dim, cout).astype(compute_dtype)
    if k_pad > k_dim:
        w_mat = jnp.pad(w_mat, ((0, k_pad - k_dim), (0, 0)))

    f32 = jnp.float32
    y_dtype = compute_dtype
    in_bytes = (patches.size * patches.dtype.itemsize
                + w_mat.size * w_mat.dtype.itemsize)
    out_bytes = (m_pad * cout * jnp.dtype(y_dtype).itemsize + num_m * 8 * cout * 4)

    # ---- conv matmul + per-tile BN partial stats (single Pallas pass) --------------
    y_p, stats = pl.pallas_call(
        _conv_stats_kernel,
        out_shape=(
            jax.ShapeDtypeStruct((m_pad, cout), y_dtype),
            jax.ShapeDtypeStruct((num_m, 8, cout), f32),
        ),
        grid_spec=pltpu.PrefetchScalarGridSpec(
            num_scalar_prefetch=0,
            grid=(num_m,),
            in_specs=[
                pl.BlockSpec((tm, k_pad), lambda i: (i, 0)),     # pipelined patch tile
                pl.BlockSpec((k_pad, cout), lambda i: (0, 0)),   # weight, DMA'd once
            ],
            out_specs=(
                pl.BlockSpec((tm, cout), lambda i: (i, 0)),
                pl.BlockSpec((1, 8, cout), lambda i: (i, 0, 0)),
            ),
        ),
        compiler_params=pltpu.CompilerParams(
            dimension_semantics=("parallel",),
            vmem_limit_bytes=32 * 1024 * 1024,
        ),
        cost_estimate=pl.CostEstimate(
            flops=2 * m_pad * k_pad * cout,
            transcendentals=0,
            bytes_accessed=in_bytes + out_bytes,
        ),
    )(patches, w_mat)

    # ---- tiny stats combine (O(num_m * Cout)) + fused BN-apply / ReLU / transpose --
    # TODO(synk): switch to a Welford/compensated combine if production M makes the
    # f32 E[x^2]-E[x]^2 cancellation visible.
    inv_m = 1.0 / float(m_rows)                      # true row count (ignores M padding)
    mean = jnp.sum(stats[:, 0, :], axis=0) * inv_m   # (Cout,)
    var = jnp.maximum(jnp.sum(stats[:, 1, :], axis=0) * inv_m - mean * mean, 0.0)
    inv_std = lax.rsqrt(var + eps)
    scale = gamma.astype(f32) * inv_std
    bias = beta.astype(f32) - mean * scale

    y = y_p[:m_rows].astype(f32)                     # fused by XLA with the transpose
    out = jnp.maximum(y * scale[None, :] + bias[None, :], 0.0)
    out = out.reshape(n, oh, ow, cout)
    return jnp.transpose(out, (0, 3, 1, 2))


def _reference(x, weight, gamma, beta, *, stride, padding, eps=1e-3):
    """Plain-JAX f32 reference mirroring the PyTorch module."""
    y = lax.conv_general_dilated(
        x, weight, window_strides=(stride, stride),
        padding=[(padding, padding), (padding, padding)],
        dimension_numbers=("NCHW", "OIHW", "NCHW"))
    mean = jnp.mean(y, axis=(0, 2, 3), keepdims=True)
    var = jnp.mean((y - mean) ** 2, axis=(0, 2, 3), keepdims=True)   # biased, as BN uses
    yhat = (y - mean) * lax.rsqrt(var + eps)
    yhat = yhat * gamma.reshape(1, -1, 1, 1) + beta.reshape(1, -1, 1, 1)
    return jnp.maximum(yhat, 0.0)


if __name__ == "__main__":
    # BasicConv2d(in_planes=4, out_planes=8, kernel_size=3, stride=1, padding=1)
    N, CIN, H, W = 2, 4, 16, 16
    COUT, KSIZE, STRIDE, PAD = 8, 3, 1, 1

    key = jax.random.PRNGKey(0)
    kx, kw_, kg, kb = jax.random.split(key, 4)

    x = jax.random.normal(kx, (N, CIN, H, W), dtype=jnp.float32)
    weight = jax.random.normal(kw_, (COUT, CIN, KSIZE, KSIZE), dtype=jnp.float32) * 0.1
    gamma = 1.0 + 0.1 * jax.random.normal(kg, (COUT,), dtype=jnp.float32)
    beta = 0.1 * jax.random.normal(kb, (COUT,), dtype=jnp.float32)

    ref = jax.block_until_ready(
        _reference(x, weight, gamma, beta, stride=STRIDE, padding=PAD, eps=1e-3))

    # exact-semantics path (f32 MXU operands): tight tolerance
    fwd_f32 = jax.jit(functools.partial(
        basic_conv2d, kernel_size=KSIZE, stride=STRIDE, padding=PAD, eps=1e-3,
        compute_dtype=jnp.float32))
    out_f32 = jax.block_until_ready(fwd_f32(x, weight, gamma, beta))
    np.testing.assert_allclose(np.asarray(out_f32), np.asarray(ref), rtol=1e-4, atol=1e-4)

    # fast default path (bf16 MXU operands + bf16 intermediate, f32 accumulation/stats)
    fwd = jax.jit(functools.partial(
        basic_conv2d, kernel_size=KSIZE, stride=STRIDE, padding=PAD, eps=1e-3))
    out = jax.block_until_ready(fwd(x, weight, gamma, beta))
    np.testing.assert_allclose(np.asarray(out), np.asarray(ref), rtol=5e-2, atol=5e-2)

    print("KERNEL_OK")
</pallas_src>

<mosaic_0001>
module attributes {stable_mosaic.version = 11 : i64} {
  func.func @_conv_stats_kernel(%arg0: i32, %arg1: memref<256x40xf32, #tpu.memory_space<vmem>>, %arg2: memref<40x8xf32, #tpu.memory_space<vmem>>, %arg3: memref<256x8xf32, #tpu.memory_space<vmem>>, %arg4: memref<1x8x8xf32, #tpu.memory_space<vmem>>) attributes {dimension_semantics = [#tpu.dimension_semantics<parallel>], iteration_bounds = array<i64: 2>, scalar_prefetch = 0 : i64, scratch_operands = 0 : i64, tpu.core_type = #tpu.core_type<tc>, window_params = [{transform_indices = @transform_0, window_bounds = array<i64: 256, 40>}, {pipeline_mode = #tpu.pipeline_mode<synchronous>, transform_indices = @transform_1, window_bounds = array<i64: 40, 8>}, {transform_indices = @transform_2, window_bounds = array<i64: 256, 8>}, {transform_indices = @transform_3, window_bounds = array<i64: 1, 8, 8>}]} {
    %c0 = arith.constant 0 : index
    %c0_0 = arith.constant 0 : index
    %0 = vector.load %arg1[%c0, %c0_0] : memref<256x40xf32, #tpu.memory_space<vmem>>, vector<256x40xf32>
    %c0_1 = arith.constant 0 : index
    %c0_2 = arith.constant 0 : index
    %1 = vector.load %arg2[%c0_1, %c0_2] : memref<40x8xf32, #tpu.memory_space<vmem>>, vector<40x8xf32>
    %cst = arith.constant dense<0.000000e+00> : vector<256x8xf32>
    %2 = tpu.matmul %0, %1, %cst {dimension_numbers = #tpu.dot_dimension_numbers<[1], [0], [0], [1], [0, 0, 1, 1], [], []>} : vector<256x40xf32>, vector<40x8xf32>, vector<256x8xf32> -> vector<256x8xf32>
    %c0_3 = arith.constant 0 : index
    %c0_4 = arith.constant 0 : index
    %3 = vector.load %arg3[%c0_3, %c0_4] : memref<256x8xf32, #tpu.memory_space<vmem>>, vector<256x8xf32>
    tpu.vector_store %arg3[%c0_3, %c0_4], %2 {strides = array<i32>} : memref<256x8xf32, #tpu.memory_space<vmem>>, vector<256x8xf32>,
    %cst_5 = arith.constant dense<0.000000e+00> : vector<8xf32>
    %4 = vector.multi_reduction <add>, %2, %cst_5 [0] : vector<256x8xf32> to vector<8xf32>
    %5 = vector.shape_cast %4 : vector<8xf32> to vector<1x8xf32>
    %6 = arith.mulf %2, %2 : vector<256x8xf32>
    %cst_6 = arith.constant dense<0.000000e+00> : vector<8xf32>
    %7 = vector.multi_reduction <add>, %6, %cst_6 [0] : vector<256x8xf32> to vector<8xf32>
    %8 = vector.shape_cast %7 : vector<8xf32> to vector<1x8xf32>
    %9 = tpu.iota {dimensions = array<i32: 0>} : vector<8x8xi32>
    %c0_i32 = arith.constant 0 : i32
    %10 = vector.broadcast %c0_i32 : i32 to vector<8x8xi32>
    %11 = arith.cmpi eq, %9, %10 : vector<8x8xi32>
    %cst_7 = arith.constant 0.000000e+00 : f32
    %12 = vector.shape_cast %5 : vector<1x8xf32> to vector<1x8xf32>
    %13 = vector.broadcast %12 : vector<1x8xf32> to vector<8x8xf32>
    %14 = vector.broadcast %cst_7 : f32 to vector<8x8xf32>
    %15 = arith.select %11, %13, %14 : vector<8x8xi1>, vector<8x8xf32>
    %c1_i32 = arith.constant 1 : i32
    %16 = vector.broadcast %c1_i32 : i32 to vector<8x8xi32>
    %17 = arith.cmpi eq, %9, %16 : vector<8x8xi32>
    %cst_8 = arith.constant 0.000000e+00 : f32
    %18 = vector.shape_cast %8 : vector<1x8xf32> to vector<1x8xf32>
    %19 = vector.broadcast %18 : vector<1x8xf32> to vector<8x8xf32>
    %20 = vector.broadcast %cst_8 : f32 to vector<8x8xf32>
    %21 = arith.select %17, %19, %20 : vector<8x8xi1>, vector<8x8xf32>
    %22 = arith.addf %15, %21 : vector<8x8xf32>
    %23 = vector.shape_cast %22 : vector<8x8xf32> to vector<1x8x8xf32>
    %c0_9 = arith.constant 0 : index
    %c0_10 = arith.constant 0 : index
    %c0_11 = arith.constant 0 : index
    %24 = vector.load %arg4[%c0_9, %c0_10, %c0_11] : memref<1x8x8xf32, #tpu.memory_space<vmem>>, vector<1x8x8xf32>
    tpu.vector_store %arg4[%c0_9, %c0_10, %c0_11], %23 {strides = array<i32>} : memref<1x8x8xf32, #tpu.memory_space<vmem>>, vector<1x8x8xf32>,
    return
  }
  func.func @transform_0(%arg0: i32) -> (i32, i32) {
    %c0_i32 = arith.constant 0 : i32
    %c0_i32_0 = arith.constant 0 : i32
    return %arg0, %c0_i32 : i32, i32
  }
  func.func @transform_1(%arg0: i32) -> (i32, i32) {
    %c0_i32 = arith.constant 0 : i32
    %c0_i32_0 = arith.constant 0 : i32
    %c0_i32_1 = arith.constant 0 : i32
    return %c0_i32, %c0_i32_0 : i32, i32
  }
  func.func @transform_2(%arg0: i32) -> (i32, i32) {
    %c0_i32 = arith.constant 0 : i32
    %c0_i32_0 = arith.constant 0 : i32
    return %arg0, %c0_i32 : i32, i32
  }
  func.func @transform_3(%arg0: i32) -> (i32, i32, i32) {
    %c0_i32 = arith.constant 0 : i32
    %c0_i32_0 = arith.constant 0 : i32
    %c0_i32_1 = arith.constant 0 : i32
    return %arg0, %c0_i32, %c0_i32_0 : i32, i32, i32
  }
}

</mosaic_0001>

<llo_original>
// kernel: basic_conv2d.1
$region0: #{basic_conv2d.1}
  #allocation0 [shape = 'u32[]', space=smem, size = 0x4, offset = 0x4, fixed_abs, tag = 'smem constant byte address 0x4 - core index']
  #allocation1 [shape = 'u32[72,128]{1,0:T(1,128)}', space=vmem, size = 0x9000, scoped, tag = 'internal scratch']
  %s0 = inlined_call_operand.vmem [shape: f32[512,40], index: 0, kind: input, shape index: {}]
  %s1 = inlined_call_operand.vmem [shape: f32[40,8], index: 1, kind: input, shape index: {}]
  %s2 = inlined_call_operand.vmem [shape: f32[512,8], index: 2, kind: output, shape index: {0}]
  %s3 = inlined_call_operand.vmem [shape: f32[2,8,8], index: 3, kind: output, shape index: {1}]
  %4 = xla_tuple %s2, %s3
  %s5 = sld [smem:[#allocation0]]
  $region49: #{basic_conv2d.1} parent=0
    _
  %s7 = ssub.s32 1, %s5
  %s8 = scalar_select 0, %s7, %s5
  loop: start=0, step=1, limit=4
  $region2: #{basic_conv2d.1} parent=0 // loop_pre_header
    _
  $region3: #{basic_conv2d.1} parent=0 // loop_header
    %s10 = sphi 0, %s14
    %p11 = scmp.ge.s32.totalorder %s10, 4
    %s20 = sphi 0, %s22
    %s23 = sphi 0, %s20
    %s24 = sphi 0, %s23
    %s40 = sphi 0, %s24
    %s44 = sphi 0, %s44
    %s46 = sphi 0, %s44
    %s47 = sphi 0, %s46
    %s61 = sphi 0, %s47
    %s67 = sphi 0, %s69
    %s70 = sphi 0, %s67
    %s71 = sphi 0, %s70
    %s87 = sphi 0, %s71
    %s93 = sphi 0, %s95
    %s96 = sphi 0, %s93
    %s97 = sphi 0, %s96
    %s113 = sphi 0, %s97
  $region4: #{basic_conv2d.1} parent=0 // loop_header_branch
    %13 = sbr.rel (%p11) target = $region8
  $region5: #{basic_conv2d.1} parent=0 // loop_body
    %s15 = ssub.s32 %s10, 1
    %s16 = ssub.s32 %s10, 2
    %s17 = sadd.s32 %s10, 1
    %s18 = ssub.s32 %s10, %s17
    %p19 = scmp.eq.s32.totalorder %s18, 0
    %s21 = sadd.s32 %s20, 1
    %s22 = scalar_select %p19, %s20, %s21
    %p25 = pneg %p19
    %p26 = scmp.eq.s32.totalorder %s10, 1
    %p27 = por %p25, %p26
    %p28 = scmp.ne.s32.totalorder %s20, %s23
    %p29 = scmp.eq.s32.totalorder %s10, 0
    %p30 = por %p28, %p29
    %p31 = scmp.ne.s32.totalorder %s20, %s23
    %p32 = scmp.eq.s32.totalorder %s15, 1
    %p33 = por %p31, %p32
    %p34 = scmp.ne.s32.totalorder %s23, %s24
    %p35 = scmp.eq.s32.totalorder %s15, 0
    %p36 = por %p34, %p35
    %p37 = scmp.ne.s32.totalorder %s23, %s24
    %p38 = scmp.eq.s32.totalorder %s16, 1
    %p39 = por %p37, %p38
    %p41 = scmp.ne.s32.totalorder %s24, %s40
    %p42 = scmp.eq.s32.totalorder %s16, 0
    %p43 = por %p41, %p42
    %s45 = sadd.s32 %s44, 1
    %p48 = scmp.eq.s32.totalorder %s10, 1
    %p49 = scmp.ne.s32.totalorder %s44, %s46
    %p50 = scmp.eq.s32.totalorder %s10, 0
    %p51 = por %p49, %p50
    %p52 = scmp.ne.s32.totalorder %s44, %s46
    %p53 = scmp.eq.s32.totalorder %s15, 1
    %p54 = por %p52, %p53
    %p55 = scmp.ne.s32.totalorder %s46, %s47
    %p56 = scmp.eq.s32.totalorder %s15, 0
    %p57 = por %p55, %p56
    %p58 = scmp.ne.s32.totalorder %s46, %s47
    %p59 = scmp.eq.s32.totalorder %s16, 1
    %p60 = por %p58, %p59
    %p62 = scmp.ne.s32.totalorder %s47, %s61
    %p63 = scmp.eq.s32.totalorder %s16, 0
    %p64 = por %p62, %p63
    %s65 = ssub.s32 %s10, %s17
    %p66 = scmp.eq.s32.totalorder %s65, 0
    %s68 = sadd.s32 %s67, 1
    %s69 = scalar_select %p66, %s67, %s68
    %p72 = pneg %p66
    %p73 = scmp.eq.s32.totalorder %s10, 1
    %p74 = por %p72, %p73
    %p75 = scmp.ne.s32.totalorder %s67, %s70
    %p76 = scmp.eq.s32.totalorder %s10, 0
    %p77 = por %p75, %p76
    %p78 = scmp.ne.s32.totalorder %s67, %s70
    %p79 = scmp.eq.s32.totalorder %s15, 1
    %p80 = por %p78, %p79
    %p81 = scmp.ne.s32.totalorder %s70, %s71
    %p82 = scmp.eq.s32.totalorder %s15, 0
    %p83 = por %p81, %p82
    %p84 = scmp.ne.s32.totalorder %s70, %s71
    %p85 = scmp.eq.s32.totalorder %s16, 1
    %p86 = por %p84, %p85
    %p88 = scmp.ne.s32.totalorder %s71, %s87
    %p89 = scmp.eq.s32.totalorder %s16, 0
    %p90 = por %p88, %p89
    %s91 = ssub.s32 %s10, %s17
    %p92 = scmp.eq.s32.totalorder %s91, 0
    %s94 = sadd.s32 %s93, 1
    %s95 = scalar_select %p92, %s93, %s94
    %p98 = pneg %p92
    %p99 = scmp.eq.s32.totalorder %s10, 1
    %p100 = por %p98, %p99
    %p101 = scmp.ne.s32.totalorder %s93, %s96
    %p102 = scmp.eq.s32.totalorder %s10, 0
    %p103 = por %p101, %p102
    %p104 = scmp.ne.s32.totalorder %s93, %s96
    %p105 = scmp.eq.s32.totalorder %s15, 1
    %p106 = por %p104, %p105
    %p107 = scmp.ne.s32.totalorder %s96, %s97
    %p108 = scmp.eq.s32.totalorder %s15, 0
    %p109 = por %p107, %p108
    %p110 = scmp.ne.s32.totalorder %s96, %s97
    %p111 = scmp.eq.s32.totalorder %s16, 1
    %p112 = por %p110, %p111
    %p114 = scmp.ne.s32.totalorder %s97, %s113
    %p115 = scmp.eq.s32.totalorder %s16, 0
    %p116 = por %p114, %p115
    %p117 = scmp.le.s32.totalorder 1, %s10
    %p118 = scmp.lt.s32.totalorder %s10, 3
    %p119 = pnand %p117, %p118
    %p120 = pneg %p119
    // Predicated region
    $region9: #{basic_conv2d.1} parent=5 // pred_check
      _
    $region10: #{basic_conv2d.1} parent=5 // pred_check_branch
      %122 = sbr.rel (%p119) target = $region12
    $region11: #{basic_conv2d.1} parent=5 // pred_region
      %s123 = ssub.s32 %s10, 1
      // Predicated region
      $region13: #{basic_conv2d.1} parent=11 // pred_check
        %p124 = pneg %p57
      $region14: #{basic_conv2d.1} parent=11 // pred_check_branch
        %126 = sbr.rel (%p124) target = $region16
      $region15: #{basic_conv2d.1} parent=11 // pred_region
        _
      $region16: #{basic_conv2d.1} parent=11 // pred_fallthru
        _
    $region12: #{basic_conv2d.1} parent=5 // pred_fallthru
      _
    %p127 = scmp.lt.s32.totalorder %s10, 2
    // Predicated region
    $region17: #{basic_conv2d.1} parent=5 // pred_check
      %p128 = pneg %p127
    $region18: #{basic_conv2d.1} parent=5 // pred_check_branch
      %130 = sbr.rel (%p128) target = $region20
    $region19: #{basic_conv2d.1} parent=5 // pred_region
      // Predicated region
      $region21: #{basic_conv2d.1} parent=19 // pred_check
        %p131 = pneg %p30
      $region22: #{basic_conv2d.1} parent=19 // pred_check_branch
        %133 = sbr.rel (%p131) target = $region24
      $region23: #{basic_conv2d.1} parent=19 // pred_region
        %s134 = smul.u32 32, %s10
        %p135 = scmp.lt.s32.totalorder %s134, 63
        %s136 = scalar_select %p135, %s134, 63
        %s137 = smul.addr %s136, 8
        %s138 = scalar_lea.vmem %s0, %s137
        %s139 = smul.u32 32, %s10
      $region24: #{basic_conv2d.1} parent=19 // pred_fallthru
        _
    $region20: #{basic_conv2d.1} parent=5 // pred_fallthru
      _
    %p140 = scmp.le.s32.totalorder 1, %s10
    %p141 = scmp.lt.s32.totalorder %s10, 3
    %p142 = pnand %p140, %p141
    %p143 = pneg %p142
    // Predicated region
    $region25: #{basic_conv2d.1} parent=5 // pred_check
      _
    $region26: #{basic_conv2d.1} parent=5 // pred_check_branch
      %145 = sbr.rel (%p142) target = $region28
    $region27: #{basic_conv2d.1} parent=5 // pred_region
      %s146 = ssub.s32 %s10, 1
      %s147 = smul.u32 32, %s15
      %p148 = scmp.lt.s32.totalorder %s147, 63
      %s149 = scalar_select %p148, %s147, 63
      %s150 = smul.addr %s149, 8
      %s151 = scalar_lea.vmem %s0, %s150
      %p152 = pneg %p36
      %p153 = pneg %p33
      %p154 = pneg %p57
      %p155 = pneg %p54
      %p156 = pneg %p83
      %p157 = pneg %p80
      %s158 = smul.u32 32, %s15
      %p159 = scmp.lt.s32.totalorder %s158, 63
      %s160 = scalar_select %p159, %s158, 63
      %s161 = smul.addr %s160, 8
      %s162 = scalar_lea.vmem %s2, %s161
      %p163 = pneg %p109
      %p164 = pneg %p106
      %p165 = scmp.lt.s32.totalorder %s15, 1
      %s166 = scalar_select %p165, %s15, 1
      %s167 = smul.addr %s166, 8
      %s168 = scalar_lea.vmem %s3, %s167
      %s169 = smul.u32 32, %s15
      %p170 = scmp.lt.s32.totalorder %s169, 63
      %s171 = scalar_select %p170, %s169, 63
      %s172 = smul.addr %s171, 8
      %s173 = scalar_lea.vmem %s0, %s172
      %s174 = smul.u32 32, %s15
      %s175 = smul.u32 32, %s15
      %p176 = scmp.lt.s32.totalorder %s175, 63
      %s177 = scalar_select %p176, %s175, 63
      %s178 = smul.addr %s177, 8
      %s179 = scalar_lea.vmem %s2, %s178
      %s180 = smul.u32 32, %s15
      %p181 = scmp.lt.s32.totalorder %s15, 1
      %s182 = scalar_select %p181, %s15, 1
      %s183 = smul.addr %s182, 8
      %s184 = scalar_lea.vmem %s3, %s183
      %v185 = vld [vmem:[%s173] sm:$0xff]
      %v186 = vld [vmem:[%s173 + $0x8] sm:$0xff]
      %v187 = vld [vmem:[%s173 + $0x10] sm:$0xff]
      %v188 = vld [vmem:[%s173 + $0x18] sm:$0xff]
      %v189 = vld [vmem:[%s173 + $0x20] sm:$0xff]
      %v190 = vld [vmem:[%s173 + $0x28] sm:$0xff]
      %v191 = vld [vmem:[%s173 + $0x30] sm:$0xff]
      %v192 = vld [vmem:[%s173 + $0x38] sm:$0xff]
      %v193 = vld [vmem:[%s173 + $0x40] sm:$0xff]
      %v194 = vld [vmem:[%s173 + $0x48] sm:$0xff]
      %v195 = vld [vmem:[%s173 + $0x50] sm:$0xff]
      %v196 = vld [vmem:[%s173 + $0x58] sm:$0xff]
      %v197 = vld [vmem:[%s173 + $0x60] sm:$0xff]
      %v198 = vld [vmem:[%s173 + $0x68] sm:$0xff]
      %v199 = vld [vmem:[%s173 + $0x70] sm:$0xff]
      %v200 = vld [vmem:[%s173 + $0x78] sm:$0xff]
      %v201 = vld [vmem:[%s173 + $0x80] sm:$0xff]
      %v202 = vld [vmem:[%s173 + $0x88] sm:$0xff]
      %v203 = vld [vmem:[%s173 + $0x90] sm:$0xff]
      %v204 = vld [vmem:[%s173 + $0x98] sm:$0xff]
      %v205 = vld [vmem:[%s173 + $0xa0] sm:$0xff]
      %v206 = vld [vmem:[%s173 + $0xa8] sm:$0xff]
      %v207 = vld [vmem:[%s173 + $0xb0] sm:$0xff]
      %v208 = vld [vmem:[%s173 + $0xb8] sm:$0xff]
      %v209 = vld [vmem:[%s173 + $0xc0] sm:$0xff]
      %v210 = vld [vmem:[%s173 + $0xc8] sm:$0xff]
      %v211 = vld [vmem:[%s173 + $0xd0] sm:$0xff]
      %v212 = vld [vmem:[%s173 + $0xd8] sm:$0xff]
      %v213 = vld [vmem:[%s173 + $0xe0] sm:$0xff]
      %v214 = vld [vmem:[%s173 + $0xe8] sm:$0xff]
      %v215 = vld [vmem:[%s173 + $0xf0] sm:$0xff]
      %v216 = vld [vmem:[%s173 + $0xf8] sm:$0xff]
      %v217 = vld [vmem:[%s1] sm:$0xff]
      %v218 = vld [vmem:[%s1 + $0x8] sm:$0xff]
      %v219 = vld [vmem:[%s1 + $0x10] sm:$0xff]
      %v220 = vld [vmem:[%s1 + $0x18] sm:$0xff]
      %v221 = vld [vmem:[%s1 + $0x20] sm:$0xff]
      %vm222 = vcmask 326656
      %v224 = vsel %vm222, %v185, 0
      %v227 = vsel %vm222, %v186, 0
      %v230 = vsel %vm222, %v187, 0
      %v233 = vsel %vm222, %v188, 0
      %v236 = vsel %vm222, %v189, 0
      %v239 = vsel %vm222, %v190, 0
      %v242 = vsel %vm222, %v191, 0
      %v245 = vsel %vm222, %v192, 0
      %v248 = vsel %vm222, %v193, 0
      %v251 = vsel %vm222, %v194, 0
      %v254 = vsel %vm222, %v195, 0
      %v257 = vsel %vm222, %v196, 0
      %v260 = vsel %vm222, %v197, 0
      %v263 = vsel %vm222, %v198, 0
      %v266 = vsel %vm222, %v199, 0
      %v269 = vsel %vm222, %v200, 0
      %v272 = vsel %vm222, %v201, 0
      %v275 = vsel %vm222, %v202, 0
      %v278 = vsel %vm222, %v203, 0
      %v281 = vsel %vm222, %v204, 0
      %v284 = vsel %vm222, %v205, 0
      %v287 = vsel %vm222, %v206, 0
      %v290 = vsel %vm222, %v207, 0
      %v293 = vsel %vm222, %v208, 0
      %v296 = vsel %vm222, %v209, 0
      %v299 = vsel %vm222, %v210, 0
      %v302 = vsel %vm222, %v211, 0
      %v305 = vsel %vm222, %v212, 0
      %v308 = vsel %vm222, %v213, 0
      %v311 = vsel %vm222, %v214, 0
      %v314 = vsel %vm222, %v215, 0
      %v317 = vsel %vm222, %v216, 0
      %319 = vmatpush.msra.mxu0 0.0
      %320 = vmatpush.msra.mxu0 0.0
      %321 = vmatpush.msra.mxu0 0.0
      %322 = vmatpush.msra.mxu0 0.0
      %323 = vmatpush.msra.mxu0 0.0
      %324 = vmatpush.msra.mxu0 0.0
      %325 = vmatpush.msra.mxu0 0.0
      %326 = vmatpush.msra.mxu0 0.0
      %327 = vmatpush.msra.mxu0 0.0
      %328 = vmatpush.msra.mxu0 0.0
      %329 = vmatpush.msra.mxu0 0.0
      %330 = vmatpush.msra.mxu0 %v221
      %331 = vmatpush.msra.mxu0 %v220
      %332 = vmatpush.msra.mxu0 %v219
      %333 = vmatpush.msra.mxu0 %v218
      %334 = vmatpush.msra.mxu0 %v217
      %335 = vmatmul.f32.gmra.mxu0 %v224
      %v336 = vpop.f32.mrf.mxu0
      %v337 = vadd.f32 0.0, %v336
      %338 = vmatmul.f32.gmra.mxu0 %v227
      %v339 = vpop.f32.mrf.mxu0
      %v340 = vadd.f32 0.0, %v339
      %341 = vmatmul.f32.gmra.mxu0 %v230
      %v342 = vpop.f32.mrf.mxu0
      %v343 = vadd.f32 0.0, %v342
      %344 = vmatmul.f32.gmra.mxu0 %v233
      %v345 = vpop.f32.mrf.mxu0
      %v346 = vadd.f32 0.0, %v345
      %347 = vmatmul.f32.gmra.mxu0 %v236
      %v348 = vpop.f32.mrf.mxu0
      %v349 = vadd.f32 0.0, %v348
      %350 = vmatmul.f32.gmra.mxu0 %v239
      %v351 = vpop.f32.mrf.mxu0
      %v352 = vadd.f32 0.0, %v351
      %353 = vmatmul.f32.gmra.mxu0 %v242
      %v354 = vpop.f32.mrf.mxu0
      %v355 = vadd.f32 0.0, %v354
      %356 = vmatmul.f32.gmra.mxu0 %v245
      %v357 = vpop.f32.mrf.mxu0
      %v358 = vadd.f32 0.0, %v357
      %359 = vmatmul.f32.gmra.mxu0 %v248
      %v360 = vpop.f32.mrf.mxu0
      %v361 = vadd.f32 0.0, %v360
      %362 = vmatmul.f32.gmra.mxu0 %v251
      %v363 = vpop.f32.mrf.mxu0
      %v364 = vadd.f32 0.0, %v363
      %365 = vmatmul.f32.gmra.mxu0 %v254
      %v366 = vpop.f32.mrf.mxu0
      %v367 = vadd.f32 0.0, %v366
      %368 = vmatmul.f32.gmra.mxu0 %v257
      %v369 = vpop.f32.mrf.mxu0
      %v370 = vadd.f32 0.0, %v369
      %371 = vmatmul.f32.gmra.mxu0 %v260
      %v372 = vpop.f32.mrf.mxu0
      %v373 = vadd.f32 0.0, %v372
      %374 = vmatmul.f32.gmra.mxu0 %v263
      %v375 = vpop.f32.mrf.mxu0
      %v376 = vadd.f32 0.0, %v375
      %377 = vmatmul.f32.gmra.mxu0 %v266
      %v378 = vpop.f32.mrf.mxu0
      %v379 = vadd.f32 0.0, %v378
      %380 = vmatmul.f32.gmra.mxu0 %v269
      %v381 = vpop.f32.mrf.mxu0
      %v382 = vadd.f32 0.0, %v381
      %383 = vmatmul.f32.gmra.mxu0 %v272
      %v384 = vpop.f32.mrf.mxu0
      %v385 = vadd.f32 0.0, %v384
      %386 = vmatmul.f32.gmra.mxu0 %v275
      %v387 = vpop.f32.mrf.mxu0
      %v388 = vadd.f32 0.0, %v387
      %389 = vmatmul.f32.gmra.mxu0 %v278
      %v390 = vpop.f32.mrf.mxu0
      %v391 = vadd.f32 0.0, %v390
      %392 = vmatmul.f32.gmra.mxu0 %v281
      %v393 = vpop.f32.mrf.mxu0
      %v394 = vadd.f32 0.0, %v393
      %395 = vmatmul.f32.gmra.mxu0 %v284
      %v396 = vpop.f32.mrf.mxu0
      %v397 = vadd.f32 0.0, %v396
      %398 = vmatmul.f32.gmra.mxu0 %v287
      %v399 = vpop.f32.mrf.mxu0
      %v400 = vadd.f32 0.0, %v399
      %401 = vmatmul.f32.gmra.mxu0 %v290
      %v402 = vpop.f32.mrf.mxu0
      %v403 = vadd.f32 0.0, %v402
      %404 = vmatmul.f32.gmra.mxu0 %v293
      %v405 = vpop.f32.mrf.mxu0
      %v406 = vadd.f32 0.0, %v405
      %407 = vmatmul.f32.gmra.mxu0 %v296
      %v408 = vpop.f32.mrf.mxu0
      %v409 = vadd.f32 0.0, %v408
      %410 = vmatmul.f32.gmra.mxu0 %v299
      %v411 = vpop.f32.mrf.mxu0
      %v412 = vadd.f32 0.0, %v411
      %413 = vmatmul.f32.gmra.mxu0 %v302
      %v414 = vpop.f32.mrf.mxu0
      %v415 = vadd.f32 0.0, %v414
      %416 = vmatmul.f32.gmra.mxu0 %v305
      %v417 = vpop.f32.mrf.mxu0
      %v418 = vadd.f32 0.0, %v417
      %419 = vmatmul.f32.gmra.mxu0 %v308
      %v420 = vpop.f32.mrf.mxu0
      %v421 = vadd.f32 0.0, %v420
      %422 = vmatmul.f32.gmra.mxu0 %v311
      %v423 = vpop.f32.mrf.mxu0
      %v424 = vadd.f32 0.0, %v423
      %425 = vmatmul.f32.gmra.mxu0 %v314
      %v426 = vpop.f32.mrf.mxu0
      %v427 = vadd.f32 0.0, %v426
      %428 = vmatmul.f32.gmra.mxu0 %v317
      %v429 = vpop.f32.mrf.mxu0
      %v430 = vadd.f32 0.0, %v429
      %431 = vdwg.mxu0
      %vm432 = vcmask 64512
      %433 = vst.msk [vmem:[%s179] sm:$0xff] %vm432, %v337
      %434 = vst.msk [vmem:[%s179 + $0x8] sm:$0xff] %vm432, %v340
      %435 = vst.msk [vmem:[%s179 + $0x10] sm:$0xff] %vm432, %v343
      %436 = vst.msk [vmem:[%s179 + $0x18] sm:$0xff] %vm432, %v346
      %437 = vst.msk [vmem:[%s179 + $0x20] sm:$0xff] %vm432, %v349
      %438 = vst.msk [vmem:[%s179 + $0x28] sm:$0xff] %vm432, %v352
      %439 = vst.msk [vmem:[%s179 + $0x30] sm:$0xff] %vm432, %v355
      %440 = vst.msk [vmem:[%s179 + $0x38] sm:$0xff] %vm432, %v358
      %441 = vst.msk [vmem:[%s179 + $0x40] sm:$0xff] %vm432, %v361
      %442 = vst.msk [vmem:[%s179 + $0x48] sm:$0xff] %vm432, %v364
      %443 = vst.msk [vmem:[%s179 + $0x50] sm:$0xff] %vm432, %v367
      %444 = vst.msk [vmem:[%s179 + $0x58] sm:$0xff] %vm432, %v370
      %445 = vst.msk [vmem:[%s179 + $0x60] sm:$0xff] %vm432, %v373
      %446 = vst.msk [vmem:[%s179 + $0x68] sm:$0xff] %vm432, %v376
      %447 = vst.msk [vmem:[%s179 + $0x70] sm:$0xff] %vm432, %v379
      %448 = vst.msk [vmem:[%s179 + $0x78] sm:$0xff] %vm432, %v382
      %449 = vst.msk [vmem:[%s179 + $0x80] sm:$0xff] %vm432, %v385
      %450 = vst.msk [vmem:[%s179 + $0x88] sm:$0xff] %vm432, %v388
      %451 = vst.msk [vmem:[%s179 + $0x90] sm:$0xff] %vm432, %v391
      %452 = vst.msk [vmem:[%s179 + $0x98] sm:$0xff] %vm432, %v394
      %453 = vst.msk [vmem:[%s179 + $0xa0] sm:$0xff] %vm432, %v397
      %454 = vst.msk [vmem:[%s179 + $0xa8] sm:$0xff] %vm432, %v400
      %455 = vst.msk [vmem:[%s179 + $0xb0] sm:$0xff] %vm432, %v403
      %456 = vst.msk [vmem:[%s179 + $0xb8] sm:$0xff] %vm432, %v406
      %457 = vst.msk [vmem:[%s179 + $0xc0] sm:$0xff] %vm432, %v409
      %458 = vst.msk [vmem:[%s179 + $0xc8] sm:$0xff] %vm432, %v412
      %459 = vst.msk [vmem:[%s179 + $0xd0] sm:$0xff] %vm432, %v415
      %460 = vst.msk [vmem:[%s179 + $0xd8] sm:$0xff] %vm432, %v418
      %461 = vst.msk [vmem:[%s179 + $0xe0] sm:$0xff] %vm432, %v421
      %462 = vst.msk [vmem:[%s179 + $0xe8] sm:$0xff] %vm432, %v424
      %463 = vst.msk [vmem:[%s179 + $0xf0] sm:$0xff] %vm432, %v427
      %464 = vst.msk [vmem:[%s179 + $0xf8] sm:$0xff] %vm432, %v430
      %v465 = vsel %vm432, %v337, 0.0
      %v466 = vsel %vm432, %v340, 0.0
      %v467 = vadd.f32 %v465, %v466
      %v468 = vsel %vm432, %v343, 0.0
      %v469 = vadd.f32 %v467, %v468
      %v470 = vsel %vm432, %v346, 0.0
      %v471 = vadd.f32 %v469, %v470
      %v472 = vsel %vm432, %v349, 0.0
      %v473 = vadd.f32 %v471, %v472
      %v474 = vsel %vm432, %v352, 0.0
      %v475 = vadd.f32 %v473, %v474
      %v476 = vsel %vm432, %v355, 0.0
      %v477 = vadd.f32 %v475, %v476
      %v478 = vsel %vm432, %v358, 0.0
      %v479 = vadd.f32 %v477, %v478
      %v480 = vsel %vm432, %v361, 0.0
      %v481 = vadd.f32 %v479, %v480
      %v482 = vsel %vm432, %v364, 0.0
      %v483 = vadd.f32 %v481, %v482
      %v484 = vsel %vm432, %v367, 0.0
      %v485 = vadd.f32 %v483, %v484
      %v486 = vsel %vm432, %v370, 0.0
      %v487 = vadd.f32 %v485, %v486
      %v488 = vsel %vm432, %v373, 0.0
      %v489 = vadd.f32 %v487, %v488
      %v490 = vsel %vm432, %v376, 0.0
      %v491 = vadd.f32 %v489, %v490
      %v492 = vsel %vm432, %v379, 0.0
      %v493 = vadd.f32 %v491, %v492
      %v494 = vsel %vm432, %v382, 0.0
      %v495 = vadd.f32 %v493, %v494
      %v496 = vsel %vm432, %v385, 0.0
      %v497 = vadd.f32 %v495, %v496
      %v498 = vsel %vm432, %v388, 0.0
      %v499 = vadd.f32 %v497, %v498
      %v500 = vsel %vm432, %v391, 0.0
      %v501 = vadd.f32 %v499, %v500
      %v502 = vsel %vm432, %v394, 0.0
      %v503 = vadd.f32 %v501, %v502
      %v504 = vsel %vm432, %v397, 0.0
      %v505 = vadd.f32 %v503, %v504
      %v506 = vsel %vm432, %v400, 0.0
      %v507 = vadd.f32 %v505, %v506
      %v508 = vsel %vm432, %v403, 0.0
      %v509 = vadd.f32 %v507, %v508
      %v510 = vsel %vm432, %v406, 0.0
      %v511 = vadd.f32 %v509, %v510
      %v512 = vsel %vm432, %v409, 0.0
      %v513 = vadd.f32 %v511, %v512
      %v514 = vsel %vm432, %v412, 0.0
      %v515 = vadd.f32 %v513, %v514
      %v516 = vsel %vm432, %v415, 0.0
      %v517 = vadd.f32 %v515, %v516
      %v518 = vsel %vm432, %v418, 0.0
      %v519 = vadd.f32 %v517, %v518
      %v520 = vsel %vm432, %v421, 0.0
      %v521 = vadd.f32 %v519, %v520
      %v522 = vsel %vm432, %v424, 0.0
      %v523 = vadd.f32 %v521, %v522
      %v524 = vsel %vm432, %v427, 0.0
      %v525 = vadd.f32 %v523, %v524
      %v526 = vsel %vm432, %v430, 0.0
      %v527 = vadd.f32 %v525, %v526
      %v528 = vrot.slane %v527, 4
      %v529 = vadd.f32 %v527, %v528
      %v530 = vrot.slane %v529, 2
      %v531 = vadd.f32 %v529, %v530
      %v532 = vrot.slane %v531, 1
      %v533 = vadd.f32 %v531, %v532
      %v534 = vmul.f32 %v337, %v337
      %v535 = vmul.f32 %v340, %v340
      %v536 = vmul.f32 %v343, %v343
      %v537 = vmul.f32 %v346, %v346
      %v538 = vmul.f32 %v349, %v349
      %v539 = vmul.f32 %v352, %v352
      %v540 = vmul.f32 %v355, %v355
      %v541 = vmul.f32 %v358, %v358
      %v542 = vmul.f32 %v361, %v361
      %v543 = vmul.f32 %v364, %v364
      %v544 = vmul.f32 %v367, %v367
      %v545 = vmul.f32 %v370, %v370
      %v546 = vmul.f32 %v373, %v373
      %v547 = vmul.f32 %v376, %v376
      %v548 = vmul.f32 %v379, %v379
      %v549 = vmul.f32 %v382, %v382
      %v550 = vmul.f32 %v385, %v385
      %v551 = vmul.f32 %v388, %v388
      %v552 = vmul.f32 %v391, %v391
      %v553 = vmul.f32 %v394, %v394
      %v554 = vmul.f32 %v397, %v397
      %v555 = vmul.f32 %v400, %v400
      %v556 = vmul.f32 %v403, %v403
      %v557 = vmul.f32 %v406, %v406
      %v558 = vmul.f32 %v409, %v409
      %v559 = vmul.f32 %v412, %v412
      %v560 = vmul.f32 %v415, %v415
      %v561 = vmul.f32 %v418, %v418
      %v562 = vmul.f32 %v421, %v421
      %v563 = vmul.f32 %v424, %v424
      %v564 = vmul.f32 %v427, %v427
      %v565 = vmul.f32 %v430, %v430
      %v566 = vsel %vm432, %v534, 0.0
      %v567 = vsel %vm432, %v535, 0.0
      %v568 = vadd.f32 %v566, %v567
      %v569 = vsel %vm432, %v536, 0.0
      %v570 = vadd.f32 %v568, %v569
      %v571 = vsel %vm432, %v537, 0.0
      %v572 = vadd.f32 %v570, %v571
      %v573 = vsel %vm432, %v538, 0.0
      %v574 = vadd.f32 %v572, %v573
      %v575 = vsel %vm432, %v539, 0.0
      %v576 = vadd.f32 %v574, %v575
      %v577 = vsel %vm432, %v540, 0.0
      %v578 = vadd.f32 %v576, %v577
      %v579 = vsel %vm432, %v541, 0.0
      %v580 = vadd.f32 %v578, %v579
      %v581 = vsel %vm432, %v542, 0.0
      %v582 = vadd.f32 %v580, %v581
      %v583 = vsel %vm432, %v543, 0.0
      %v584 = vadd.f32 %v582, %v583
      %v585 = vsel %vm432, %v544, 0.0
      %v586 = vadd.f32 %v584, %v585
      %v587 = vsel %vm432, %v545, 0.0
      %v588 = vadd.f32 %v586, %v587
      %v589 = vsel %vm432, %v546, 0.0
      %v590 = vadd.f32 %v588, %v589
      %v591 = vsel %vm432, %v547, 0.0
      %v592 = vadd.f32 %v590, %v591
      %v593 = vsel %vm432, %v548, 0.0
      %v594 = vadd.f32 %v592, %v593
      %v595 = vsel %vm432, %v549, 0.0
      %v596 = vadd.f32 %v594, %v595
      %v597 = vsel %vm432, %v550, 0.0
      %v598 = vadd.f32 %v596, %v597
      %v599 = vsel %vm432, %v551, 0.0
      %v600 = vadd.f32 %v598, %v599
      %v601 = vsel %vm432, %v552, 0.0
      %v602 = vadd.f32 %v600, %v601
      %v603 = vsel %vm432, %v553, 0.0
      %v604 = vadd.f32 %v602, %v603
      %v605 = vsel %vm432, %v554, 0.0
      %v606 = vadd.f32 %v604, %v605
      %v607 = vsel %vm432, %v555, 0.0
      %v608 = vadd.f32 %v606, %v607
      %v609 = vsel %vm432, %v556, 0.0
      %v610 = vadd.f32 %v608, %v609
      %v611 = vsel %vm432, %v557, 0.0
      %v612 = vadd.f32 %v610, %v611
      %v613 = vsel %vm432, %v558, 0.0
      %v614 = vadd.f32 %v612, %v613
      %v615 = vsel %vm432, %v559, 0.0
      %v616 = vadd.f32 %v614, %v615
      %v617 = vsel %vm432, %v560, 0.0
      %v618 = vadd.f32 %v616, %v617
      %v619 = vsel %vm432, %v561, 0.0
      %v620 = vadd.f32 %v618, %v619
      %v621 = vsel %vm432, %v562, 0.0
      %v622 = vadd.f32 %v620, %v621
      %v623 = vsel %vm432, %v563, 0.0
      %v624 = vadd.f32 %v622, %v623
      %v625 = vsel %vm432, %v564, 0.0
      %v626 = vadd.f32 %v624, %v625
      %v627 = vsel %vm432, %v565, 0.0
      %v628 = vadd.f32 %v626, %v627
      %v629 = vrot.slane %v628, 4
      %v630 = vadd.f32 %v628, %v629
      %v631 = vrot.slane %v630, 2
      %v632 = vadd.f32 %v630, %v631
      %v633 = vrot.slane %v632, 1
      %v634 = vadd.f32 %v632, %v633
      %v635 = vlaneseq
      %v636 = vshrl.u32 %v635, 7
      %vm637 = vcmp.eq.s32.totalorder %v636, 0
      %v638 = vsel %vm637, %v533, 0.0
      %vm639 = vcmp.eq.s32.totalorder %v636, 1
      %v640 = vsel %vm639, %v634, 0.0
      %v641 = vadd.f32 %v638, %v640
      %642 = vst.msk [vmem:[%s184] sm:$0xff] %vm432, %v641
      %s643 = smul.u32 32, %s15
      %p644 = scmp.lt.s32.totalorder %s643, 63
      %s645 = scalar_select %p644, %s643, 63
      %s646 = smul.addr %s645, 8
      %s647 = scalar_lea.vmem %s2, %s646
      %p648 = scmp.lt.s32.totalorder %s15, 1
      %s649 = scalar_select %p648, %s15, 1
      %s650 = smul.addr %s649, 8
      %s651 = scalar_lea.vmem %s3, %s650
      // Predicated region
      $region29: #{basic_conv2d.1} parent=27 // pred_check
        %p652 = pneg %p80
      $region30: #{basic_conv2d.1} parent=27 // pred_check_branch
        %654 = sbr.rel (%p652) target = $region32
      $region31: #{basic_conv2d.1} parent=27 // pred_region
        %s655 = smul.u32 32, %s15
      $region32: #{basic_conv2d.1} parent=27 // pred_fallthru
        _
      // Predicated region
      $region33: #{basic_conv2d.1} parent=27 // pred_check
        %p656 = pneg %p106
      $region34: #{basic_conv2d.1} parent=27 // pred_check_branch
        %658 = sbr.rel (%p656) target = $region36
      $region35: #{basic_conv2d.1} parent=27 // pred_region
        _
      $region36: #{basic_conv2d.1} parent=27 // pred_fallthru
        _
    $region28: #{basic_conv2d.1} parent=5 // pred_fallthru
      _
    %p659 = scmp.le.s32.totalorder 2, %s10
    // Predicated region
    $region37: #{basic_conv2d.1} parent=5 // pred_check
      %p660 = pneg %p659
    $region38: #{basic_conv2d.1} parent=5 // pred_check_branch
      %662 = sbr.rel (%p660) target = $region40
    $region39: #{basic_conv2d.1} parent=5 // pred_region
      %s663 = ssub.s32 %s10, 2
      // Predicated region
      $region41: #{basic_conv2d.1} parent=39 // pred_check
        %p664 = pneg %p86
      $region42: #{basic_conv2d.1} parent=39 // pred_check_branch
        %666 = sbr.rel (%p664) target = $region44
      $region43: #{basic_conv2d.1} parent=39 // pred_region
        %s667 = smul.u32 32, %s16
        %p668 = scmp.lt.s32.totalorder %s667, 63
        %s669 = scalar_select %p668, %s667, 63
        %s670 = smul.addr %s669, 8
        %s671 = scalar_lea.vmem %s2, %s670
      $region44: #{basic_conv2d.1} parent=39 // pred_fallthru
        _
      // Predicated region
      $region45: #{basic_conv2d.1} parent=39 // pred_check
        %p672 = pneg %p112
      $region46: #{basic_conv2d.1} parent=39 // pred_check_branch
        %674 = sbr.rel (%p672) target = $region48
      $region47: #{basic_conv2d.1} parent=39 // pred_region
        %p675 = scmp.lt.s32.totalorder %s16, 1
        %s676 = scalar_select %p675, %s16, 1
        %s677 = smul.addr %s676, 8
        %s678 = scalar_lea.vmem %s3, %s677
      $region48: #{basic_conv2d.1} parent=39 // pred_fallthru
        _
    $region40: #{basic_conv2d.1} parent=5 // pred_fallthru
      _
  $region6: #{basic_conv2d.1} parent=0 // loop_footer
    %s14 = sadd.s32 1, %s10
  $region7: #{basic_conv2d.1} parent=0 // loop_footer_branch
    %9 = sbr.rel target = $region3
  $region8: #{basic_conv2d.1} parent=0 // loop_exit
    _

</llo_original>
